<compile_context>
chip_gen: v7x
topology: tpu7x:2x2x1
jax: 0.10.0
libtpu: 0.0.40
codegen_flags: <defaults>
</compile_context>

<pallas_src>
import functools

import jax
import jax.numpy as jnp
from jax.experimental import pallas as pl
from jax.experimental.pallas import tpu as pltpu


def _layernorm_kernel(x_ref, w_ref, b_ref, o_ref, *, eps: float):
    """LayerNorm over the last axis of a (tile_rows, h) block.

    Matches the PyTorch module:  w * (x - mean) / (std + eps) + b
    with torch.Tensor.std semantics (unbiased, divide by N-1) and eps added
    to std (NOT to var, as nn.LayerNorm would).
    """
    x = x_ref[...].astype(jnp.float32)            # (tile_rows, h)
    w = w_ref[...].astype(jnp.float32)            # (1, h)
    b = b_ref[...].astype(jnp.float32)            # (1, h)

    n = jnp.float32(x.shape[-1])

    # Two-pass statistics: mean, then centered sum of squares. x is already in
    # VMEM, so the second reduction sweep is cheap and numerically robust
    # (no E[x^2] - mean^2 cancellation).
    mean = jnp.sum(x, axis=-1, keepdims=True) * (1.0 / n)      # (tile_rows, 1)
    xc = x - mean
    var = jnp.sum(xc * xc, axis=-1, keepdims=True) * (1.0 / (n - 1.0))
    std = jnp.sqrt(var)

    # Per-row reciprocal on the EUP (separate VLIW slot) + two Newton steps on
    # the (tile_rows, 1) column -> full f32 precision without a full-tile divide.
    denom = std + jnp.float32(eps)
    inv = pl.reciprocal(denom, approx=True)
    inv = inv * (2.0 - denom * inv)
    inv = inv * (2.0 - denom * inv)

    y = xc * inv * w + b
    o_ref[...] = y.astype(o_ref.dtype)


def _sublane_multiple(dtype) -> int:
    # Minimum sublane tiling: 8 for 32-bit, 16 for 16-bit, 32 for 8-bit dtypes.
    return max(8, 32 // jnp.dtype(dtype).itemsize)


def _per_row_vmem_bytes(h: int, in_dtype, out_dtype) -> int:
    in_b = jnp.dtype(in_dtype).itemsize
    out_b = jnp.dtype(out_dtype).itemsize
    # Double-buffered input + output blocks plus ~3 f32 working copies
    # (x_f32, centered x, y_f32) per the real in-kernel footprint.
    return h * (2 * in_b + 2 * out_b + 3 * 4)


def _pick_tile_rows(rows: int, h: int, in_dtype, out_dtype) -> int:
    sub = max(_sublane_multiple(in_dtype), _sublane_multiple(out_dtype))
    per_row = _per_row_vmem_bytes(h, in_dtype, out_dtype)
    rows_up = ((rows + sub - 1) // sub) * sub

    # ~24 MiB of total pipelined data (double-buffered blocks + f32 temps):
    # comfortably under v7x's 64 MiB VMEM per TensorCore, trivially fine on
    # v5e/v6e (128 MiB), and still several MiB of HBM traffic per step so the
    # ~0.35 us per-step overhead stays small.
    budget = 24 * 1024 * 1024
    tile = budget // per_row
    tile = max(sub, min(1024, (tile // sub) * sub))

    # Guarantee pipeline depth: aim for >= ~4 grid steps so inbound DMA,
    # compute and writeback overlap and the v7x megacore gets a balanced split.
    depth_cap = ((pl.cdiv(rows_up, 4) + sub - 1) // sub) * sub
    tile = min(tile, max(sub, depth_cap))

    # No point tiling beyond the (sublane-rounded) number of rows.
    return min(tile, rows_up)


def layer_norm(x: jax.Array, w: jax.Array, b: jax.Array, eps: float = 1e-6) -> jax.Array:
    orig_shape = x.shape
    h = orig_shape[-1]
    assert h >= 2, "unbiased std (divide by N-1) requires feature_size >= 2"

    out_dtype = x.dtype
    x2 = x.reshape(-1, h)
    rows = x2.shape[0]

    # No hidden-axis padding: the block's last dim equals the true H (allowed
    # when block dim == full array dim). Tail-lane stores may be masked when
    # H % 128 != 0, but that is far cheaper than extra pad/slice HBM passes.
    w2 = w.reshape(1, h)
    b2 = b.reshape(1, h)

    tile_rows = _pick_tile_rows(rows, h, x.dtype, out_dtype)
    grid = (pl.cdiv(rows, tile_rows),)

    per_row = _per_row_vmem_bytes(h, x.dtype, out_dtype)
    vmem_limit = int(min(40 * 1024 * 1024, tile_rows * per_row + (8 << 20)))

    kernel = functools.partial(_layernorm_kernel, eps=eps)

    out = pl.pallas_call(
        kernel,
        out_shape=jax.ShapeDtypeStruct((rows, h), out_dtype),
        grid_spec=pltpu.PrefetchScalarGridSpec(
            num_scalar_prefetch=0,
            grid=grid,
            in_specs=[
                pl.BlockSpec((tile_rows, h), lambda i: (i, 0)),
                pl.BlockSpec((1, h), lambda i: (0, 0)),
                pl.BlockSpec((1, h), lambda i: (0, 0)),
            ],
            out_specs=pl.BlockSpec((tile_rows, h), lambda i: (i, 0)),
        ),
        compiler_params=pltpu.CompilerParams(
            # Row tiles are independent work: keep the axis parallel so it is
            # sharded across the 2 TensorCores on v7x (no-op on v5e/v6e).
            dimension_semantics=("parallel",),
            vmem_limit_bytes=vmem_limit,
        ),
    )(x2, w2, b2)

    return out.reshape(orig_shape)


if __name__ == "__main__":
    batch, seq, hidden = 2, 8, 32

    key = jax.random.PRNGKey(0)
    x = jax.random.normal(key, (batch, seq, hidden), dtype=jnp.float32)

    # Deterministic parameter init, matching nn.Parameter(torch.ones/zeros(feature_size))
    w = jnp.ones((hidden,), dtype=jnp.float32)
    b = jnp.zeros((hidden,), dtype=jnp.float32)

    y = layer_norm(x, w, b, eps=1e-6)
    y = jax.block_until_ready(y)

    # Pure-JAX reference (unbiased std, eps added to std — same as the torch module).
    mean = jnp.mean(x, axis=-1, keepdims=True)
    diff = x - mean
    var = jnp.sum(diff * diff, axis=-1, keepdims=True) / (hidden - 1)
    ref = w * diff / (jnp.sqrt(var) + 1e-6) + b

    assert y.shape == x.shape and y.dtype == x.dtype
    assert jnp.allclose(y, ref, atol=1e-5, rtol=1e-4), "mismatch vs reference"

    print("KERNEL_OK")
</pallas_src>

<mosaic_0001>
module attributes {stable_mosaic.version = 11 : i64} {
  func.func @_layernorm_kernel(%arg0: i32, %arg1: memref<8x32xf32, #tpu.memory_space<vmem>>, %arg2: memref<1x32xf32, #tpu.memory_space<vmem>>, %arg3: memref<1x32xf32, #tpu.memory_space<vmem>>, %arg4: memref<8x32xf32, #tpu.memory_space<vmem>>) attributes {dimension_semantics = [#tpu.dimension_semantics<parallel>], iteration_bounds = array<i64: 2>, scalar_prefetch = 0 : i64, scratch_operands = 0 : i64, tpu.core_type = #tpu.core_type<tc>, window_params = [{transform_indices = @transform_0, window_bounds = array<i64: 8, 32>}, {pipeline_mode = #tpu.pipeline_mode<synchronous>, transform_indices = @transform_1, window_bounds = array<i64: 1, 32>}, {pipeline_mode = #tpu.pipeline_mode<synchronous>, transform_indices = @transform_2, window_bounds = array<i64: 1, 32>}, {transform_indices = @transform_3, window_bounds = array<i64: 8, 32>}]} {
    %c0 = arith.constant 0 : index
    %c0_0 = arith.constant 0 : index
    %0 = vector.load %arg1[%c0, %c0_0] : memref<8x32xf32, #tpu.memory_space<vmem>>, vector<8x32xf32>
    %c0_1 = arith.constant 0 : index
    %c0_2 = arith.constant 0 : index
    %1 = vector.load %arg2[%c0_1, %c0_2] : memref<1x32xf32, #tpu.memory_space<vmem>>, vector<1x32xf32>
    %c0_3 = arith.constant 0 : index
    %c0_4 = arith.constant 0 : index
    %2 = vector.load %arg3[%c0_3, %c0_4] : memref<1x32xf32, #tpu.memory_space<vmem>>, vector<1x32xf32>
    %cst = arith.constant dense<0.000000e+00> : vector<8xf32>
    %3 = vector.multi_reduction <add>, %0, %cst [1] : vector<8x32xf32> to vector<8xf32>
    %4 = vector.shape_cast %3 : vector<8xf32> to vector<8x1xf32>
    %cst_5 = arith.constant 1.000000e+00 : f32
    %cst_6 = arith.constant 3.200000e+01 : f32
    %5 = arith.divf %cst_5, %cst_6 : f32
    %6 = vector.broadcast %5 : f32 to vector<8x1xf32>
    %7 = arith.mulf %4, %6 : vector<8x1xf32>
    %8 = vector.broadcast %7 : vector<8x1xf32> to vector<8x32xf32>
    %9 = arith.subf %0, %8 : vector<8x32xf32>
    %10 = arith.mulf %9, %9 : vector<8x32xf32>
    %cst_7 = arith.constant dense<0.000000e+00> : vector<8xf32>
    %11 = vector.multi_reduction <add>, %10, %cst_7 [1] : vector<8x32xf32> to vector<8xf32>
    %12 = vector.shape_cast %11 : vector<8xf32> to vector<8x1xf32>
    %cst_8 = arith.constant 3.200000e+01 : f32
    %cst_9 = arith.constant 1.000000e+00 : f32
    %13 = arith.subf %cst_8, %cst_9 : f32
    %cst_10 = arith.constant 1.000000e+00 : f32
    %14 = arith.divf %cst_10, %13 : f32
    %15 = vector.broadcast %14 : f32 to vector<8x1xf32>
    %16 = arith.mulf %12, %15 : vector<8x1xf32>
    %17 = math.sqrt %16 : vector<8x1xf32>
    %cst_11 = arith.constant 9.99999997E-7 : f32
    %18 = vector.broadcast %cst_11 : f32 to vector<8x1xf32>
    %19 = arith.addf %17, %18 : vector<8x1xf32>
    %20 = tpu.reciprocal %19 {approx = true} : vector<8x1xf32> -> vector<8x1xf32>
    %21 = arith.mulf %19, %20 : vector<8x1xf32>
    %cst_12 = arith.constant 2.000000e+00 : f32
    %22 = vector.broadcast %cst_12 : f32 to vector<8x1xf32>
    %23 = arith.subf %22, %21 : vector<8x1xf32>
    %24 = arith.mulf %20, %23 : vector<8x1xf32>
    %25 = arith.mulf %19, %24 : vector<8x1xf32>
    %cst_13 = arith.constant 2.000000e+00 : f32
    %26 = vector.broadcast %cst_13 : f32 to vector<8x1xf32>
    %27 = arith.subf %26, %25 : vector<8x1xf32>
    %28 = arith.mulf %24, %27 : vector<8x1xf32>
    %29 = vector.broadcast %28 : vector<8x1xf32> to vector<8x32xf32>
    %30 = arith.mulf %9, %29 : vector<8x32xf32>
    %31 = vector.broadcast %1 : vector<1x32xf32> to vector<8x32xf32>
    %32 = arith.mulf %30, %31 : vector<8x32xf32>
    %33 = vector.broadcast %2 : vector<1x32xf32> to vector<8x32xf32>
    %34 = arith.addf %32, %33 : vector<8x32xf32>
    %c0_14 = arith.constant 0 : index
    %c0_15 = arith.constant 0 : index
    %35 = vector.load %arg4[%c0_14, %c0_15] : memref<8x32xf32, #tpu.memory_space<vmem>>, vector<8x32xf32>
    tpu.vector_store %arg4[%c0_14, %c0_15], %34 {strides = array<i32>} : memref<8x32xf32, #tpu.memory_space<vmem>>, vector<8x32xf32>,
    return
  }
  func.func @transform_0(%arg0: i32) -> (i32, i32) {
    %c0_i32 = arith.constant 0 : i32
    %c0_i32_0 = arith.constant 0 : i32
    return %arg0, %c0_i32 : i32, i32
  }
  func.func @transform_1(%arg0: i32) -> (i32, i32) {
    %c0_i32 = arith.constant 0 : i32
    %c0_i32_0 = arith.constant 0 : i32
    %c0_i32_1 = arith.constant 0 : i32
    return %c0_i32, %c0_i32_0 : i32, i32
  }
  func.func @transform_2(%arg0: i32) -> (i32, i32) {
    %c0_i32 = arith.constant 0 : i32
    %c0_i32_0 = arith.constant 0 : i32
    %c0_i32_1 = arith.constant 0 : i32
    return %c0_i32, %c0_i32_0 : i32, i32
  }
  func.func @transform_3(%arg0: i32) -> (i32, i32) {
    %c0_i32 = arith.constant 0 : i32
    %c0_i32_0 = arith.constant 0 : i32
    return %arg0, %c0_i32 : i32, i32
  }
}

</mosaic_0001>

<llo_original>
// kernel: tpu_custom_call.1
$region0: #{tpu_custom_call.1}
  #allocation0 [shape = 'u32[]', space=smem, size = 0x4, offset = 0x4, fixed_abs, tag = 'smem constant byte address 0x4 - core index']
  #allocation1 [shape = 'u32[144,128]{1,0:T(1,128)}', space=vmem, size = 0x12000, scoped, tag = 'internal scratch']
  %s0 = inlined_call_operand.hbm [shape: f32[16,32], index: 0, kind: input, shape index: {}]
  %s1 = inlined_call_operand.vmem [shape: f32[1,32], index: 1, kind: input, shape index: {}]
  %s2 = inlined_call_operand.vmem [shape: f32[1,32], index: 2, kind: input, shape index: {}]
  %s3 = inlined_call_operand.hbm [shape: f32[16,32], index: 3, kind: output, shape index: {}]
  %s4 = sld [smem:[#allocation0]]
  $region49: #{tpu_custom_call.1} parent=0
    _
  %s6 = ssub.s32 1, %s4
  %s7 = scalar_select 0, %s6, %s4
  $region1: #{tpu_custom_call.1} parent=0
    #allocation2 [shape = 'u8[8192]{0}', space=vmem, size = 0x2000, scoped, tag = 'input window, operand 0']
    #allocation3 [shape = 's32[2]{0}', space=sflag, size = 0x8, scoped, tag = 'scoped memory for tpu_custom_call.1']
    #allocation4 [shape = 's32[2]{0}', space=sflag, size = 0x8, scoped, tag = 'scoped memory for tpu_custom_call.1']
    #allocation5 [shape = 'u8[8192]{0}', space=vmem, size = 0x2000, scoped, tag = 'output window, operand 0']
    %8 = vsyncpa [#allocation3], 0
    %s9 = scalar_lea.sflag [#allocation3], 1
    %10 = vsyncpa %s9, 0
    %11 = vsyncpa [#allocation4], 0
    %s12 = scalar_lea.sflag [#allocation4], 1
    %13 = vsyncpa %s12, 0
    loop: start=0, step=1, limit=4
    $region2: #{tpu_custom_call.1} parent=1 // loop_pre_header
      _
    $region3: #{tpu_custom_call.1} parent=1 // loop_header
      %s15 = sphi 0, %s19
      %p16 = scmp.ge.s32.totalorder %s15, 4
      %s25 = sphi 0, %s27
      %s28 = sphi 0, %s25
      %s29 = sphi 0, %s28
      %s45 = sphi 0, %s29
      %s49 = sphi 0, %s49
      %s51 = sphi 0, %s49
      %s52 = sphi 0, %s51
      %s66 = sphi 0, %s52
      %s70 = sphi 0, %s70
      %s72 = sphi 0, %s70
      %s73 = sphi 0, %s72
      %s87 = sphi 0, %s73
      %s93 = sphi 0, %s95
      %s96 = sphi 0, %s93
      %s97 = sphi 0, %s96
      %s113 = sphi 0, %s97
    $region4: #{tpu_custom_call.1} parent=1 // loop_header_branch
      %18 = sbr.rel (%p16) target = $region8
    $region5: #{tpu_custom_call.1} parent=1 // loop_body
      %s20 = ssub.s32 %s15, 1
      %s21 = ssub.s32 %s15, 2
      %s22 = sadd.s32 %s15, 1
      %s23 = ssub.s32 %s15, %s22
      %p24 = scmp.eq.s32.totalorder %s23, 0
      %s26 = sadd.s32 %s25, 1
      %s27 = scalar_select %p24, %s25, %s26
      %p30 = pneg %p24
      %p31 = scmp.eq.s32.totalorder %s15, 1
      %p32 = por %p30, %p31
      %p33 = scmp.ne.s32.totalorder %s25, %s28
      %p34 = scmp.eq.s32.totalorder %s15, 0
      %p35 = por %p33, %p34
      %p36 = scmp.ne.s32.totalorder %s25, %s28
      %p37 = scmp.eq.s32.totalorder %s20, 1
      %p38 = por %p36, %p37
      %p39 = scmp.ne.s32.totalorder %s28, %s29
      %p40 = scmp.eq.s32.totalorder %s20, 0
      %p41 = por %p39, %p40
      %p42 = scmp.ne.s32.totalorder %s28, %s29
      %p43 = scmp.eq.s32.totalorder %s21, 1
      %p44 = por %p42, %p43
      %p46 = scmp.ne.s32.totalorder %s29, %s45
      %p47 = scmp.eq.s32.totalorder %s21, 0
      %p48 = por %p46, %p47
      %s50 = sadd.s32 %s49, 1
      %p53 = scmp.eq.s32.totalorder %s15, 1
      %p54 = scmp.ne.s32.totalorder %s49, %s51
      %p55 = scmp.eq.s32.totalorder %s15, 0
      %p56 = por %p54, %p55
      %p57 = scmp.ne.s32.totalorder %s49, %s51
      %p58 = scmp.eq.s32.totalorder %s20, 1
      %p59 = por %p57, %p58
      %p60 = scmp.ne.s32.totalorder %s51, %s52
      %p61 = scmp.eq.s32.totalorder %s20, 0
      %p62 = por %p60, %p61
      %p63 = scmp.ne.s32.totalorder %s51, %s52
      %p64 = scmp.eq.s32.totalorder %s21, 1
      %p65 = por %p63, %p64
      %p67 = scmp.ne.s32.totalorder %s52, %s66
      %p68 = scmp.eq.s32.totalorder %s21, 0
      %p69 = por %p67, %p68
      %s71 = sadd.s32 %s70, 1
      %p74 = scmp.eq.s32.totalorder %s15, 1
      %p75 = scmp.ne.s32.totalorder %s70, %s72
      %p76 = scmp.eq.s32.totalorder %s15, 0
      %p77 = por %p75, %p76
      %p78 = scmp.ne.s32.totalorder %s70, %s72
      %p79 = scmp.eq.s32.totalorder %s20, 1
      %p80 = por %p78, %p79
      %p81 = scmp.ne.s32.totalorder %s72, %s73
      %p82 = scmp.eq.s32.totalorder %s20, 0
      %p83 = por %p81, %p82
      %p84 = scmp.ne.s32.totalorder %s72, %s73
      %p85 = scmp.eq.s32.totalorder %s21, 1
      %p86 = por %p84, %p85
      %p88 = scmp.ne.s32.totalorder %s73, %s87
      %p89 = scmp.eq.s32.totalorder %s21, 0
      %p90 = por %p88, %p89
      %s91 = ssub.s32 %s15, %s22
      %p92 = scmp.eq.s32.totalorder %s91, 0
      %s94 = sadd.s32 %s93, 1
      %s95 = scalar_select %p92, %s93, %s94
      %p98 = pneg %p92
      %p99 = scmp.eq.s32.totalorder %s15, 1
      %p100 = por %p98, %p99
      %p101 = scmp.ne.s32.totalorder %s93, %s96
      %p102 = scmp.eq.s32.totalorder %s15, 0
      %p103 = por %p101, %p102
      %p104 = scmp.ne.s32.totalorder %s93, %s96
      %p105 = scmp.eq.s32.totalorder %s20, 1
      %p106 = por %p104, %p105
      %p107 = scmp.ne.s32.totalorder %s96, %s97
      %p108 = scmp.eq.s32.totalorder %s20, 0
      %p109 = por %p107, %p108
      %p110 = scmp.ne.s32.totalorder %s96, %s97
      %p111 = scmp.eq.s32.totalorder %s21, 1
      %p112 = por %p110, %p111
      %p114 = scmp.ne.s32.totalorder %s97, %s113
      %p115 = scmp.eq.s32.totalorder %s21, 0
      %p116 = por %p114, %p115
      %p117 = scmp.le.s32.totalorder 1, %s15
      %p118 = scmp.lt.s32.totalorder %s15, 3
      %p119 = pnand %p117, %p118
      %p120 = pneg %p119
      // Predicated region
      $region9: #{tpu_custom_call.1} parent=5 // pred_check
        _
      $region10: #{tpu_custom_call.1} parent=5 // pred_check_branch
        %122 = sbr.rel (%p119) target = $region12
      $region11: #{tpu_custom_call.1} parent=5 // pred_region
        %s123 = ssub.s32 %s15, 1
        // Predicated region
        $region13: #{tpu_custom_call.1} parent=11 // pred_check
          %p124 = pneg %p62
        $region14: #{tpu_custom_call.1} parent=11 // pred_check_branch
          %126 = sbr.rel (%p124) target = $region16
        $region15: #{tpu_custom_call.1} parent=11 // pred_region
          _
        $region16: #{tpu_custom_call.1} parent=11 // pred_fallthru
          _
        // Predicated region
        $region17: #{tpu_custom_call.1} parent=11 // pred_check
          %p127 = pneg %p83
        $region18: #{tpu_custom_call.1} parent=11 // pred_check_branch
          %129 = sbr.rel (%p127) target = $region20
        $region19: #{tpu_custom_call.1} parent=11 // pred_region
          _
        $region20: #{tpu_custom_call.1} parent=11 // pred_fallthru
          _
      $region12: #{tpu_custom_call.1} parent=5 // pred_fallthru
        _
      %p130 = scmp.lt.s32.totalorder %s15, 2
      // Predicated region
      $region21: #{tpu_custom_call.1} parent=5 // pred_check
        %p131 = pneg %p130
      $region22: #{tpu_custom_call.1} parent=5 // pred_check_branch
        %133 = sbr.rel (%p131) target = $region24
      $region23: #{tpu_custom_call.1} parent=5 // pred_region
        // Predicated region
        $region25: #{tpu_custom_call.1} parent=23 // pred_check
          %p134 = pneg %p35
        $region26: #{tpu_custom_call.1} parent=23 // pred_check_branch
          %136 = sbr.rel (%p134) target = $region28
        $region27: #{tpu_custom_call.1} parent=23 // pred_region
          %s137 = sand.u32 %s25, 1
          %s138 = scalar_lea.sflag [#allocation3], %s137
          %s139 = sand.u32 %s25, 1
          %s140 = smul.addr %s139, 8
          %s141 = scalar_lea.vmem [#allocation2], %s140
          %s143 = ssub.s32 128, 128
          %144 = vsyncadd %s138, %s143
          %s145 = smul.addr %s15, 128
          %s146 = scalar_lea.hbm %s0, %s145
          %s148 = sshll.u32 %s141, 4
          %s149 = int_to_ptr.vmem [resolvable:$true] %s148
          %151 = dma.hbm_to_vmem [thread:$0]  %s146, 128, %s149, %s138
        $region28: #{tpu_custom_call.1} parent=23 // pred_fallthru
          _
      $region24: #{tpu_custom_call.1} parent=5 // pred_fallthru
        _
      %p152 = scmp.le.s32.totalorder 1, %s15
      %p153 = scmp.lt.s32.totalorder %s15, 3
      %p154 = pnand %p152, %p153
      %p155 = pneg %p154
      // Predicated region
      $region29: #{tpu_custom_call.1} parent=5 // pred_check
        _
      $region30: #{tpu_custom_call.1} parent=5 // pred_check_branch
        %157 = sbr.rel (%p154) target = $region32
      $region31: #{tpu_custom_call.1} parent=5 // pred_region
        %s158 = ssub.s32 %s15, 1
        %s159 = sand.u32 %s28, 1
        %s160 = scalar_lea.sflag [#allocation3], %s159
        %s161 = sand.u32 %s28, 1
        %s162 = smul.addr %s161, 8
        %s163 = scalar_lea.vmem [#allocation2], %s162
        // Predicated region
        $region33: #{tpu_custom_call.1} parent=31 // pred_check
          %p164 = pneg %p41
        $region34: #{tpu_custom_call.1} parent=31 // pred_check_branch
          %166 = sbr.rel (%p164) target = $region36
        $region35: #{tpu_custom_call.1} parent=31 // pred_region
          %167 = dma.done %s160, 128
        $region36: #{tpu_custom_call.1} parent=31 // pred_fallthru
          _
        %s168 = sand.u32 %s28, 1
        %s169 = scalar_lea.sflag [#allocation3], %s168
        %s170 = sand.u32 %s28, 1
        %s171 = smul.addr %s170, 8
        %s172 = scalar_lea.vmem [#allocation2], %s171
        %p173 = pneg %p41
        %p174 = pneg %p38
        %p175 = pneg %p62
        %p176 = pneg %p59
        %p177 = pneg %p83
        %p178 = pneg %p80
        %p179 = pneg %p109
        %p180 = pneg %p106
        %s181 = sand.u32 %s96, 1
        %s182 = scalar_lea.sflag [#allocation4], %s181
        %s183 = sand.u32 %s96, 1
        %s184 = smul.addr %s183, 8
        %s185 = scalar_lea.vmem [#allocation5], %s184
        %v186 = vld [vmem:[%s163] sm:$0xff]
        %v187 = vld [vmem:[%s1] sm:$0x1]
        %v188 = vld [vmem:[%s2] sm:$0x1]
        %vm189 = vcmask 261120
        %v190 = vsel %vm189, %v186, 0.0
        %191 = vadd.xlane.f32.xlu0 %v190
        %v192 = vpop.xlane.xlu0 %191
        %v193 = vmul.f32 %v192, 0.03125
        %v194 = vsub.f32 %v186, %v193
        %v195 = vmul.f32 %v194, %v194
        %v196 = vsel %vm189, %v195, 0.0
        %197 = vadd.xlane.f32.xlu0 %v196
        %v198 = vpop.xlane.xlu0 %197
        %v199 = vmul.f32 %v198, 0.032258064
        %v200 = vrsqrt.pop %v199
        %v201 = vmul.f32 %v199, %v200
        %vm202 = vcmp.eq.f32.partialorder %v199, inf
        %v203 = vsel %vm202, %v199, %v201
        %vm204 = vcmp.eq.f32.partialorder %v199, 0.0
        %v205 = vand.u32 %v199, 2147483648
        %v206 = vsel %vm204, %v205, %v203
        %v207 = vadd.f32 %v206, 1e-06
        %v208 = vrcp.pop %v207
        %v209 = vmul.f32 %v207, %v208
        %v210 = vsub.f32 2.0, %v209
        %v211 = vmul.f32 %v208, %v210
        %v212 = vmul.f32 %v207, %v211
        %v213 = vsub.f32 2.0, %v212
        %v214 = vmul.f32 %v211, %v213
        %v215 = vmul.f32 %v194, %v214
        %v217 = vlaneseq
        %v218 = vshrl.u32 %v217, 7
        %v219 = vsub.s32 0, %v218
        %v220 = vrot.slane %v187, %v219
        %v222 = vmul.f32 %v215, %v220
        %v224 = vlaneseq
        %v225 = vshrl.u32 %v224, 7
        %v226 = vsub.s32 0, %v225
        %v227 = vrot.slane %v188, %v226
        %v229 = vadd.f32 %v222, %v227
        %230 = vst.msk [vmem:[%s185] sm:$0xff] %vm189, %v229
        %s231 = sand.u32 %s96, 1
        %s232 = scalar_lea.sflag [#allocation4], %s231
        %s233 = sand.u32 %s96, 1
        %s234 = smul.addr %s233, 8
        %s235 = scalar_lea.vmem [#allocation5], %s234
        // Predicated region
        $region37: #{tpu_custom_call.1} parent=31 // pred_check
          %p236 = pneg %p106
        $region38: #{tpu_custom_call.1} parent=31 // pred_check_branch
          %238 = sbr.rel (%p236) target = $region40
        $region39: #{tpu_custom_call.1} parent=31 // pred_region
          %s240 = ssub.s32 128, 128
          %241 = vsyncadd %s232, %s240
          %s242 = smul.addr %s20, 128
          %s243 = scalar_lea.hbm %s3, %s242
          %s245 = sshll.u32 %s235, 4
          %s246 = int_to_ptr.vmem [resolvable:$true] %s245
          %248 = dma.vmem_to_hbm [thread:$0]  %s246, 128, %s243, %s232
        $region40: #{tpu_custom_call.1} parent=31 // pred_fallthru
          _
      $region32: #{tpu_custom_call.1} parent=5 // pred_fallthru
        _
      %p249 = scmp.le.s32.totalorder 2, %s15
      // Predicated region
      $region41: #{tpu_custom_call.1} parent=5 // pred_check
        %p250 = pneg %p249
      $region42: #{tpu_custom_call.1} parent=5 // pred_check_branch
        %252 = sbr.rel (%p250) target = $region44
      $region43: #{tpu_custom_call.1} parent=5 // pred_region
        %s253 = ssub.s32 %s15, 2
        // Predicated region
        $region45: #{tpu_custom_call.1} parent=43 // pred_check
          %p254 = pneg %p112
        $region46: #{tpu_custom_call.1} parent=43 // pred_check_branch
          %256 = sbr.rel (%p254) target = $region48
        $region47: #{tpu_custom_call.1} parent=43 // pred_region
          %s257 = sand.u32 %s97, 1
          %s258 = scalar_lea.sflag [#allocation4], %s257
          %s259 = sand.u32 %s97, 1
          %s260 = smul.addr %s259, 8
          %s261 = scalar_lea.vmem [#allocation5], %s260
          %262 = dma.done %s258, 128
        $region48: #{tpu_custom_call.1} parent=43 // pred_fallthru
          _
      $region44: #{tpu_custom_call.1} parent=5 // pred_fallthru
        _
    $region6: #{tpu_custom_call.1} parent=1 // loop_footer
      %s19 = sadd.s32 1, %s15
    $region7: #{tpu_custom_call.1} parent=1 // loop_footer_branch
      %14 = sbr.rel target = $region3
    $region8: #{tpu_custom_call.1} parent=1 // loop_exit
      _
    %263 = vsyncpa [#allocation3], 1
    %s264 = scalar_lea.sflag [#allocation3], 1
    %265 = vsyncpa %s264, 1
    %266 = vsyncpa [#allocation4], 1
    %s267 = scalar_lea.sflag [#allocation4], 1
    %268 = vsyncpa %s267, 1

</llo_original>
